<compile_context>
chip_gen: v5e
topology: v5e:2x2
jax: 0.10.0
libtpu: 0.0.40
codegen_flags: <defaults>
</compile_context>

<pallas_src>
import functools

import jax
import jax.numpy as jnp
import numpy as np
from jax import lax
from jax.experimental import pallas as pl
from jax.experimental.pallas import tpu as pltpu


_UNROLL_LAYER_LIMIT = 4  # fully unroll the layer loop up to this many layers


def _layer_step(x, w, b, d_pad):
    """One highway layer on an f32 activation tile.

    x: [block_n, Dp] f32, w: [Dp, 2*Dp] native dtype, b: [1, 2*Dp] f32.
    Single fused matmul for [gate | transform]; f32 accumulate on the MXU.
    """
    z = jnp.dot(x.astype(w.dtype), w, preferred_element_type=jnp.float32) + b
    g = jax.nn.sigmoid(z[:, :d_pad])          # gate
    h = jnp.maximum(z[:, d_pad:], 0.0)        # transform (relu)
    # x + g*(h - x) == g*h + (1-g)*x, one fewer vector multiply per element.
    return x + g * (h - x)


def _hw_resident_kernel(x_ref, w_ref, b_ref, o_ref, *, num_layers, d_pad):
    """All highway layers for one row-tile; every layer's weights resident in VMEM.

    x_ref: [block_n, Dp], w_ref: [L, Dp, 2*Dp], b_ref: [L, 1, 2*Dp], o_ref: [block_n, Dp].
    """
    x = x_ref[...].astype(jnp.float32)
    if num_layers <= _UNROLL_LAYER_LIMIT:
        for l in range(num_layers):
            x = _layer_step(x, w_ref[l], b_ref[l].astype(jnp.float32), d_pad)
    else:
        def body(l, xv):
            return _layer_step(xv, w_ref[l], b_ref[l].astype(jnp.float32), d_pad)
        x = lax.fori_loop(0, num_layers, body, x)
    o_ref[...] = x.astype(o_ref.dtype)


def _hw_stream_kernel(x_ref, w_ref, b_ref, o_ref, acc_ref, *, d_pad):
    """One highway layer per grid step along the trailing 'arbitrary' layer axis.

    Activation lives in acc_ref (VMEM scratch) across the layer axis; only two layer
    weight slabs are ever resident (double-buffered by Pallas).
    """
    l = pl.program_id(1)

    @pl.when(l == 0)
    def _():
        acc_ref[...] = x_ref[...].astype(jnp.float32)

    x = acc_ref[...]
    acc_ref[...] = _layer_step(x, w_ref[0], b_ref[0].astype(jnp.float32), d_pad)

    @pl.when(l == pl.num_programs(1) - 1)
    def _():
        o_ref[...] = acc_ref[...].astype(o_ref.dtype)


def _pick_block_n(n, itemsize):
    """Row-tile size: fill the MXU M dimension; respect sublane packing per dtype."""
    row_align = {4: 8, 2: 16, 1: 32}.get(int(itemsize), 8)
    n_al = pl.cdiv(n, row_align) * row_align
    if n_al <= 256:
        # Weights are resident / streamed independently of rows, so a single grid step
        # has nothing to overlap; avoid per-step overhead on single-TC chips (v5e/v6e).
        # TODO(synk): on v7x, force an even number of >= 2 row blocks so both TCs work.
        return n_al
    return 256  # fills the 256-row MXU M dim on v6e/v7x; 2x128 passes on v5e


def pack_hw_params(params, weight_dtype=None):
    """Pre-transpose, fuse gate+transform along the output axis, pad D to a 128-multiple.

    Returns (w_cat [L, Dp, 2*Dp], b_cat [L, 1, 2*Dp]).  Done once at init time.
    Only the weights are cast to weight_dtype (e.g. bf16); biases stay in their
    original (f32) dtype since they are added after the f32 accumulation.
    """
    D = params[0]["w_gate"].shape[0]
    Dp = ((D + 127) // 128) * 128
    ws, bs = [], []
    for layer in params:
        wg_t = layer["w_gate"].T                   # y = x @ W.T  ->  store W.T
        wt_t = layer["w_trans"].T
        if weight_dtype is not None:
            wg_t = wg_t.astype(weight_dtype)
            wt_t = wt_t.astype(weight_dtype)
        wg_p = jnp.zeros((Dp, Dp), wg_t.dtype).at[:D, :D].set(wg_t)
        wt_p = jnp.zeros((Dp, Dp), wt_t.dtype).at[:D, :D].set(wt_t)
        bg_p = jnp.zeros((1, Dp), layer["b_gate"].dtype).at[:, :D].set(layer["b_gate"])
        bt_p = jnp.zeros((1, Dp), layer["b_trans"].dtype).at[:, :D].set(layer["b_trans"])
        ws.append(jnp.concatenate([wg_p, wt_p], axis=1))   # [Dp, 2*Dp]
        bs.append(jnp.concatenate([bg_p, bt_p], axis=1))   # [1, 2*Dp]
    return jnp.stack(ws, axis=0), jnp.stack(bs, axis=0)


def hw_forward(x2d, w_cat, b_cat, *, block_n=None, mode="auto"):
    """Full HW forward on a [N, D] token matrix via one fused pallas_call.

    mode: "resident" (all layer weights in VMEM), "stream" (one layer per grid step),
    or "auto" (pick based on weight VMEM footprint, sized for v7x's 64 MiB VMEM).
    """
    N, D = x2d.shape
    L, Dp, two_dp = w_cat.shape
    assert two_dp == 2 * Dp
    out_dtype = x2d.dtype

    # Lane-dense feature padding (zeros are exact for the highway recurrence).
    if D < Dp:
        x2d = jnp.pad(x2d, ((0, 0), (0, Dp - D)))

    x_itemsize = jnp.dtype(x2d.dtype).itemsize
    if block_n is None:
        block_n = _pick_block_n(N, x_itemsize)
    n_blocks = pl.cdiv(N, block_n)
    Np = n_blocks * block_n
    if Np > N:
        x2d = jnp.pad(x2d, ((0, Np - N), (0, 0)))

    w_itemsize = jnp.dtype(w_cat.dtype).itemsize
    b_itemsize = jnp.dtype(b_cat.dtype).itemsize
    w_bytes = L * Dp * 2 * Dp * w_itemsize
    b_bytes = L * 2 * Dp * b_itemsize
    tile_bytes = block_n * Dp * x_itemsize
    out_tile_bytes = block_n * Dp * jnp.dtype(out_dtype).itemsize
    headroom = 4 * block_n * Dp * 4 + (2 << 20)        # f32 temporaries + slack

    if mode == "auto":
        mode = "resident" if (w_bytes + b_bytes) <= (24 << 20) else "stream"

    # Advisory cost estimate for XLA's scheduler around the custom call.
    cost = pl.CostEstimate(
        flops=2 * L * Np * Dp * (2 * Dp) + 6 * L * Np * Dp,
        transcendentals=L * Np * Dp,                   # sigmoid per layer per element
        bytes_accessed=(Np * Dp * x_itemsize
                        + Np * Dp * jnp.dtype(out_dtype).itemsize
                        + w_bytes + b_bytes),
    )

    if mode == "resident":
        # Buffered(1): constant index_map => no re-DMA, single buffer halves weight VMEM.
        vmem_limit = w_bytes + b_bytes + 2 * tile_bytes + 2 * out_tile_bytes + headroom
        vmem_limit = int(min(max(vmem_limit, 32 << 20), 64 << 20))
        out = pl.pallas_call(
            functools.partial(_hw_resident_kernel, num_layers=L, d_pad=Dp),
            out_shape=jax.ShapeDtypeStruct((Np, Dp), out_dtype),
            grid_spec=pltpu.PrefetchScalarGridSpec(
                num_scalar_prefetch=0,
                grid=(n_blocks,),
                in_specs=[
                    pl.BlockSpec((block_n, Dp), lambda i: (i, 0)),         # x tile (pipelined)
                    pl.BlockSpec((L, Dp, 2 * Dp), lambda i: (0, 0, 0),     # resident weights
                                 pipeline_mode=pl.Buffered(1)),
                    pl.BlockSpec((L, 1, 2 * Dp), lambda i: (0, 0, 0),      # resident biases
                                 pipeline_mode=pl.Buffered(1)),
                ],
                out_specs=pl.BlockSpec((block_n, Dp), lambda i: (i, 0)),
            ),
            compiler_params=pltpu.CompilerParams(
                dimension_semantics=("parallel",),                          # row tiles -> v7x TCs
                vmem_limit_bytes=vmem_limit),
            cost_estimate=cost,
        )(x2d, w_cat, b_cat)
    else:
        w_slab = Dp * 2 * Dp * w_itemsize
        b_slab = 2 * Dp * b_itemsize
        vmem_limit = (2 * w_slab + 2 * b_slab + 2 * tile_bytes + 2 * out_tile_bytes
                      + block_n * Dp * 4 + headroom)
        vmem_limit = int(min(max(vmem_limit, 32 << 20), 64 << 20))
        out = pl.pallas_call(
            functools.partial(_hw_stream_kernel, d_pad=Dp),
            out_shape=jax.ShapeDtypeStruct((Np, Dp), out_dtype),
            grid_spec=pltpu.PrefetchScalarGridSpec(
                num_scalar_prefetch=0,
                grid=(n_blocks, L),                                         # layers innermost
                in_specs=[
                    pl.BlockSpec((block_n, Dp), lambda i, l: (i, 0)),       # x tile (held across l)
                    pl.BlockSpec((1, Dp, 2 * Dp), lambda i, l: (l, 0, 0)),  # one layer's weights
                    pl.BlockSpec((1, 1, 2 * Dp), lambda i, l: (l, 0, 0)),   # one layer's biases
                ],
                out_specs=pl.BlockSpec((block_n, Dp), lambda i, l: (i, 0)),
                scratch_shapes=[pltpu.VMEM((block_n, Dp), jnp.float32)],    # carried activation
            ),
            compiler_params=pltpu.CompilerParams(
                dimension_semantics=("parallel", "arbitrary"),
                vmem_limit_bytes=vmem_limit),
            cost_estimate=cost,
        )(x2d, w_cat, b_cat)

    return out[:N, :D]


def init_hw_params(key, dim, num_layers=1, dtype=jnp.float32):
    """Deterministic init matching HW.reset_parameters:
       weights ~ U(-sqrt(3/dim), sqrt(3/dim)), biases = 0."""
    stdv = float(np.sqrt(3.0 / dim))
    params = []
    for _ in range(num_layers):
        key, kt, kg = jax.random.split(key, 3)
        w_trans = jax.random.uniform(kt, (dim, dim), dtype, minval=-stdv, maxval=stdv)
        w_gate = jax.random.uniform(kg, (dim, dim), dtype, minval=-stdv, maxval=stdv)
        b_trans = jnp.zeros((1, dim), dtype)
        b_gate = jnp.zeros((1, dim), dtype)
        params.append(dict(w_trans=w_trans, b_trans=b_trans,
                           w_gate=w_gate, b_gate=b_gate))
    return params


def hw_forward_ref(x, params):
    """Pure-JAX reference for correctness check (inference-mode dropout == identity)."""
    for layer in params:
        g = jax.nn.sigmoid(x @ layer["w_gate"].T + layer["b_gate"][0])
        h = jax.nn.relu(x @ layer["w_trans"].T + layer["b_trans"][0])
        x = g * h + (1.0 - g) * x
    return x


if __name__ == "__main__":
    key = jax.random.PRNGKey(0)
    batch, seq, dim = 2, 8, 32
    num_layers = 2

    key, kx = jax.random.split(key)
    x = jax.random.normal(kx, (batch, seq, dim), dtype=jnp.float32)
    x2d = x.reshape(batch * seq, dim)

    # --- Case 1: small L -> resident weights, unrolled layer loop ----------------
    params = init_hw_params(key, dim, num_layers=num_layers)
    w_cat, b_cat = pack_hw_params(params)               # pre-transpose + fuse + pad ONCE
    ref = np.asarray(hw_forward_ref(x2d, params))

    out_res = jax.block_until_ready(hw_forward(x2d, w_cat, b_cat, mode="resident"))
    np.testing.assert_allclose(np.asarray(out_res), ref, rtol=1e-5, atol=2e-5)

    # --- Case 2: same weights through the layer-streaming variant ----------------
    out_str = jax.block_until_ready(hw_forward(x2d, w_cat, b_cat, mode="stream"))
    np.testing.assert_allclose(np.asarray(out_str), ref, rtol=1e-5, atol=2e-5)

    # --- Case 3: deeper stack -> resident weights, lax.fori_loop layer loop ------
    params6 = init_hw_params(jax.random.PRNGKey(1), dim, num_layers=6)
    w6, b6 = pack_hw_params(params6)
    ref6 = np.asarray(hw_forward_ref(x2d, params6))
    out6 = jax.block_until_ready(hw_forward(x2d, w6, b6, mode="resident"))
    np.testing.assert_allclose(np.asarray(out6), ref6, rtol=1e-5, atol=5e-5)

    print("KERNEL_OK")
</pallas_src>

<mosaic_0001>
module attributes {stable_mosaic.version = 11 : i64} {
  func.func @_hw_resident_kernel(%arg0: i32, %arg1: memref<16x128xf32, #tpu.memory_space<vmem>>, %arg2: memref<2x128x256xf32, #tpu.memory_space<vmem>>, %arg3: memref<2x1x256xf32, #tpu.memory_space<vmem>>, %arg4: memref<16x128xf32, #tpu.memory_space<vmem>>) attributes {dimension_semantics = [#tpu.dimension_semantics<parallel>], iteration_bounds = array<i64: 1>, scalar_prefetch = 0 : i64, scratch_operands = 0 : i64, tpu.core_type = #tpu.core_type<tc>, window_params = [{transform_indices = @transform_0, window_bounds = array<i64: 16, 128>}, {pipeline_mode = #tpu.pipeline_mode<synchronous>, transform_indices = @transform_1, window_bounds = array<i64: 2, 128, 256>}, {pipeline_mode = #tpu.pipeline_mode<synchronous>, transform_indices = @transform_2, window_bounds = array<i64: 2, 1, 256>}, {transform_indices = @transform_3, window_bounds = array<i64: 16, 128>}]} {
    %c0 = arith.constant 0 : index
    %c0_0 = arith.constant 0 : index
    %0 = vector.load %arg1[%c0, %c0_0] : memref<16x128xf32, #tpu.memory_space<vmem>>, vector<16x128xf32>
    %c0_1 = arith.constant 0 : index
    %c0_2 = arith.constant 0 : index
    %c0_3 = arith.constant 0 : index
    %1 = vector.load %arg2[%c0_1, %c0_2, %c0_3] : memref<2x128x256xf32, #tpu.memory_space<vmem>>, vector<1x128x256xf32>
    %2 = vector.shape_cast %1 : vector<1x128x256xf32> to vector<128x256xf32>
    %c0_4 = arith.constant 0 : index
    %c0_5 = arith.constant 0 : index
    %c0_6 = arith.constant 0 : index
    %3 = vector.load %arg3[%c0_4, %c0_5, %c0_6] : memref<2x1x256xf32, #tpu.memory_space<vmem>>, vector<1x1x256xf32>
    %4 = vector.shape_cast %3 : vector<1x1x256xf32> to vector<1x256xf32>
    %cst = arith.constant dense<0.000000e+00> : vector<16x256xf32>
    %5 = tpu.matmul %0, %2, %cst {dimension_numbers = #tpu.dot_dimension_numbers<[1], [0], [0], [1], [0, 0, 1, 1], [], []>} : vector<16x128xf32>, vector<128x256xf32>, vector<16x256xf32> -> vector<16x256xf32>
    %6 = vector.broadcast %4 : vector<1x256xf32> to vector<16x256xf32>
    %7 = arith.addf %5, %6 : vector<16x256xf32>
    %8 = vector.extract_strided_slice %7 {offsets = [0, 0], sizes = [16, 128], strides = [1, 1]} : vector<16x256xf32> to vector<16x128xf32>
    %9 = arith.negf %8 : vector<16x128xf32>
    %10 = math.exp %9 : vector<16x128xf32>
    %cst_7 = arith.constant 1.000000e+00 : f32
    %11 = vector.broadcast %cst_7 : f32 to vector<16x128xf32>
    %12 = arith.addf %11, %10 : vector<16x128xf32>
    %13 = arith.divf %11, %12 : vector<16x128xf32>
    %14 = vector.extract_strided_slice %7 {offsets = [0, 128], sizes = [16, 128], strides = [1, 1]} : vector<16x256xf32> to vector<16x128xf32>
    %cst_8 = arith.constant 0.000000e+00 : f32
    %15 = vector.broadcast %cst_8 : f32 to vector<16x128xf32>
    %16 = arith.maximumf %14, %15 : vector<16x128xf32>
    %17 = arith.subf %16, %0 : vector<16x128xf32>
    %18 = arith.mulf %13, %17 : vector<16x128xf32>
    %19 = arith.addf %0, %18 : vector<16x128xf32>
    %c1 = arith.constant 1 : index
    %c0_9 = arith.constant 0 : index
    %c0_10 = arith.constant 0 : index
    %20 = vector.load %arg2[%c1, %c0_9, %c0_10] : memref<2x128x256xf32, #tpu.memory_space<vmem>>, vector<1x128x256xf32>
    %21 = vector.shape_cast %20 : vector<1x128x256xf32> to vector<128x256xf32>
    %c1_11 = arith.constant 1 : index
    %c0_12 = arith.constant 0 : index
    %c0_13 = arith.constant 0 : index
    %22 = vector.load %arg3[%c1_11, %c0_12, %c0_13] : memref<2x1x256xf32, #tpu.memory_space<vmem>>, vector<1x1x256xf32>
    %23 = vector.shape_cast %22 : vector<1x1x256xf32> to vector<1x256xf32>
    %cst_14 = arith.constant dense<0.000000e+00> : vector<16x256xf32>
    %24 = tpu.matmul %19, %21, %cst_14 {dimension_numbers = #tpu.dot_dimension_numbers<[1], [0], [0], [1], [0, 0, 1, 1], [], []>} : vector<16x128xf32>, vector<128x256xf32>, vector<16x256xf32> -> vector<16x256xf32>
    %25 = vector.broadcast %23 : vector<1x256xf32> to vector<16x256xf32>
    %26 = arith.addf %24, %25 : vector<16x256xf32>
    %27 = vector.extract_strided_slice %26 {offsets = [0, 0], sizes = [16, 128], strides = [1, 1]} : vector<16x256xf32> to vector<16x128xf32>
    %28 = arith.negf %27 : vector<16x128xf32>
    %29 = math.exp %28 : vector<16x128xf32>
    %cst_15 = arith.constant 1.000000e+00 : f32
    %30 = vector.broadcast %cst_15 : f32 to vector<16x128xf32>
    %31 = arith.addf %30, %29 : vector<16x128xf32>
    %32 = arith.divf %30, %31 : vector<16x128xf32>
    %33 = vector.extract_strided_slice %26 {offsets = [0, 128], sizes = [16, 128], strides = [1, 1]} : vector<16x256xf32> to vector<16x128xf32>
    %cst_16 = arith.constant 0.000000e+00 : f32
    %34 = vector.broadcast %cst_16 : f32 to vector<16x128xf32>
    %35 = arith.maximumf %33, %34 : vector<16x128xf32>
    %36 = arith.subf %35, %19 : vector<16x128xf32>
    %37 = arith.mulf %32, %36 : vector<16x128xf32>
    %38 = arith.addf %19, %37 : vector<16x128xf32>
    %c0_17 = arith.constant 0 : index
    %c0_18 = arith.constant 0 : index
    %39 = vector.load %arg4[%c0_17, %c0_18] : memref<16x128xf32, #tpu.memory_space<vmem>>, vector<16x128xf32>
    tpu.vector_store %arg4[%c0_17, %c0_18], %38 {strides = array<i32>} : memref<16x128xf32, #tpu.memory_space<vmem>>, vector<16x128xf32>,
    return
  }
  func.func @transform_0(%arg0: i32) -> (i32, i32) {
    %c0_i32 = arith.constant 0 : i32
    %c0_i32_0 = arith.constant 0 : i32
    return %arg0, %c0_i32 : i32, i32
  }
  func.func @transform_1(%arg0: i32) -> (i32, i32, i32) {
    %c0_i32 = arith.constant 0 : i32
    %c0_i32_0 = arith.constant 0 : i32
    %c0_i32_1 = arith.constant 0 : i32
    %c0_i32_2 = arith.constant 0 : i32
    return %c0_i32, %c0_i32_0, %c0_i32_1 : i32, i32, i32
  }
  func.func @transform_2(%arg0: i32) -> (i32, i32, i32) {
    %c0_i32 = arith.constant 0 : i32
    %c0_i32_0 = arith.constant 0 : i32
    %c0_i32_1 = arith.constant 0 : i32
    %c0_i32_2 = arith.constant 0 : i32
    return %c0_i32, %c0_i32_0, %c0_i32_1 : i32, i32, i32
  }
  func.func @transform_3(%arg0: i32) -> (i32, i32) {
    %c0_i32 = arith.constant 0 : i32
    %c0_i32_0 = arith.constant 0 : i32
    return %arg0, %c0_i32 : i32, i32
  }
}

</mosaic_0001>

<llo_original>
// kernel: tpu_custom_call.1
$region0: #{tpu_custom_call.1}
  #allocation0 [shape = 'u32[]', space=smem, size = 0x4, offset = 0x4, fixed_abs, tag = 'smem constant byte address 0x4 - core index']
  #allocation1 [shape = 'u32[72,128]{1,0:T(1,128)}', space=vmem, size = 0x9000, scoped, tag = 'internal scratch']
  %s0 = inlined_call_operand.hbm [shape: f32[16,128], index: 0, kind: input, shape index: {}]
  %s1 = inlined_call_operand.hbm [shape: f32[2,128,256], index: 1, kind: input, shape index: {}]
  %s2 = inlined_call_operand.hbm [shape: f32[2,1,256], index: 2, kind: input, shape index: {}]
  %s3 = inlined_call_operand.hbm [shape: f32[16,128], index: 3, kind: output, shape index: {}]
  %s4 = sld [smem:[#allocation0]]
  $region34: #{tpu_custom_call.1} parent=0
    _
  %s6 = ssub.s32 1, %s4
  %s7 = scalar_select 0, %s6, %s4
  $region1: #{tpu_custom_call.1} parent=0
    #allocation2 [shape = 'u8[8192]{0}', space=vmem, size = 0x2000, scoped, tag = 'input window, operand 0, single buffered']
    #allocation3 [shape = 's32[1]{0}', space=sflag, size = 0x4, scoped, tag = 'scoped memory for tpu_custom_call.1']
    #allocation4 [shape = 's32[1]{0}', space=sflag, size = 0x4, scoped, tag = 'scoped memory for tpu_custom_call.1']
    #allocation5 [shape = 'u8[262144]{0}', space=vmem, size = 0x40000, scoped, tag = 'input window, operand 1, single buffered']
    #allocation6 [shape = 's32[1]{0}', space=sflag, size = 0x4, scoped, tag = 'scoped memory for tpu_custom_call.1']
    #allocation7 [shape = 'u8[2048]{0}', space=vmem, size = 0x800, scoped, tag = 'input window, operand 2, single buffered']
    #allocation8 [shape = 'u8[8192]{0}', space=vmem, size = 0x2000, scoped, tag = 'output window, operand 0, single buffered']
    %8 = vsyncpa [#allocation3], 0
    %9 = vsyncpa [#allocation6], 0
    %10 = vsyncpa [#allocation4], 0
    // Predicated region
    $region2: #{tpu_custom_call.1} parent=1 // pred_check
      _
    $region3: #{tpu_custom_call.1} parent=1 // pred_check_branch
      %12 = sbr.rel (0) target = $region5
    $region4: #{tpu_custom_call.1} parent=1 // pred_region
      %14 = vsyncadd [#allocation3], 0
      %s15 = sshll.u32 %s0, 4
      %s16 = int_to_ptr.hbm [resolvable:$true] %s15
      %s17 = sshll.u32 [#allocation2], 4
      %s18 = int_to_ptr.vmem [resolvable:$true] %s17
      %23 = dma.hbm_to_vmem [thread:$0]  %s16, 256, %s18, [#allocation3], 128, 128, 8
    $region5: #{tpu_custom_call.1} parent=1 // pred_fallthru
      _
    // Predicated region
    $region6: #{tpu_custom_call.1} parent=1 // pred_check
      _
    $region7: #{tpu_custom_call.1} parent=1 // pred_check_branch
      %25 = sbr.rel (0) target = $region9
    $region8: #{tpu_custom_call.1} parent=1 // pred_region
      %27 = vsyncadd [#allocation6], 0
      %s28 = sshll.u32 %s1, 4
      %s29 = int_to_ptr.hbm [resolvable:$true] %s28
      %s30 = sshll.u32 [#allocation5], 4
      %s31 = int_to_ptr.vmem [resolvable:$true] %s30
      %36 = dma.hbm_to_vmem [thread:$0]  %s29, 8192, %s31, [#allocation6], 256, 256, 16
    $region9: #{tpu_custom_call.1} parent=1 // pred_fallthru
      _
    // Predicated region
    $region10: #{tpu_custom_call.1} parent=1 // pred_check
      _
    $region11: #{tpu_custom_call.1} parent=1 // pred_check_branch
      %38 = sbr.rel (0) target = $region13
    $region12: #{tpu_custom_call.1} parent=1 // pred_region
      %40 = vsyncadd [#allocation6], 0
      %s41 = sshll.u32 %s2, 4
      %s42 = int_to_ptr.hbm [resolvable:$true] %s41
      %s43 = sshll.u32 [#allocation7], 4
      %s44 = int_to_ptr.vmem [resolvable:$true] %s43
      %49 = dma.hbm_to_vmem [thread:$0]  %s42, 64, %s44, [#allocation6], 32, 32, 2
    $region13: #{tpu_custom_call.1} parent=1 // pred_fallthru
      _
    // Predicated region
    $region14: #{tpu_custom_call.1} parent=1 // pred_check
      _
    $region15: #{tpu_custom_call.1} parent=1 // pred_check_branch
      %51 = sbr.rel (0) target = $region17
    $region16: #{tpu_custom_call.1} parent=1 // pred_region
      %53 = dma.done [#allocation3], 256
    $region17: #{tpu_custom_call.1} parent=1 // pred_fallthru
      _
    // Predicated region
    $region18: #{tpu_custom_call.1} parent=1 // pred_check
      _
    $region19: #{tpu_custom_call.1} parent=1 // pred_check_branch
      %55 = sbr.rel (0) target = $region21
    $region20: #{tpu_custom_call.1} parent=1 // pred_region
      %57 = dma.done [#allocation6], 8192
    $region21: #{tpu_custom_call.1} parent=1 // pred_fallthru
      _
    // Predicated region
    $region22: #{tpu_custom_call.1} parent=1 // pred_check
      _
    $region23: #{tpu_custom_call.1} parent=1 // pred_check_branch
      %59 = sbr.rel (0) target = $region25
    $region24: #{tpu_custom_call.1} parent=1 // pred_region
      %61 = dma.done [#allocation6], 64
    $region25: #{tpu_custom_call.1} parent=1 // pred_fallthru
      _
    %v62 = vld [vmem:[#allocation2] sm:$0xff]
    %v63 = vld [vmem:[#allocation2 + $0x8] sm:$0xff]
    %v64 = vld [vmem:[#allocation5] sm:$0xff]
    %v65 = vld [vmem:[#allocation5 + $0x8] sm:$0xff]
    %v66 = vld [vmem:[#allocation5 + $0x10] sm:$0xff]
    %v67 = vld [vmem:[#allocation5 + $0x18] sm:$0xff]
    %v68 = vld [vmem:[#allocation5 + $0x20] sm:$0xff]
    %v69 = vld [vmem:[#allocation5 + $0x28] sm:$0xff]
    %v70 = vld [vmem:[#allocation5 + $0x30] sm:$0xff]
    %v71 = vld [vmem:[#allocation5 + $0x38] sm:$0xff]
    %v72 = vld [vmem:[#allocation5 + $0x40] sm:$0xff]
    %v73 = vld [vmem:[#allocation5 + $0x48] sm:$0xff]
    %v74 = vld [vmem:[#allocation5 + $0x50] sm:$0xff]
    %v75 = vld [vmem:[#allocation5 + $0x58] sm:$0xff]
    %v76 = vld [vmem:[#allocation5 + $0x60] sm:$0xff]
    %v77 = vld [vmem:[#allocation5 + $0x68] sm:$0xff]
    %v78 = vld [vmem:[#allocation5 + $0x70] sm:$0xff]
    %v79 = vld [vmem:[#allocation5 + $0x78] sm:$0xff]
    %v80 = vld [vmem:[#allocation5 + $0x80] sm:$0xff]
    %v81 = vld [vmem:[#allocation5 + $0x88] sm:$0xff]
    %v82 = vld [vmem:[#allocation5 + $0x90] sm:$0xff]
    %v83 = vld [vmem:[#allocation5 + $0x98] sm:$0xff]
    %v84 = vld [vmem:[#allocation5 + $0xa0] sm:$0xff]
    %v85 = vld [vmem:[#allocation5 + $0xa8] sm:$0xff]
    %v86 = vld [vmem:[#allocation5 + $0xb0] sm:$0xff]
    %v87 = vld [vmem:[#allocation5 + $0xb8] sm:$0xff]
    %v88 = vld [vmem:[#allocation5 + $0xc0] sm:$0xff]
    %v89 = vld [vmem:[#allocation5 + $0xc8] sm:$0xff]
    %v90 = vld [vmem:[#allocation5 + $0xd0] sm:$0xff]
    %v91 = vld [vmem:[#allocation5 + $0xd8] sm:$0xff]
    %v92 = vld [vmem:[#allocation5 + $0xe0] sm:$0xff]
    %v93 = vld [vmem:[#allocation5 + $0xe8] sm:$0xff]
    %v94 = vld [vmem:[#allocation5 + $0xf0] sm:$0xff]
    %v95 = vld [vmem:[#allocation5 + $0xf8] sm:$0xff]
    %v96 = vld [vmem:[#allocation7] sm:$0x3]
    %v98 = vperm.slane %v96, 0
    %v99 = vperm.slane %v96, 1
    %102 = vmatpush.msra.mxu0 %v94
    %103 = vmatpush.msra.mxu0 %v92
    %104 = vmatpush.msra.mxu0 %v90
    %105 = vmatpush.msra.mxu0 %v88
    %106 = vmatpush.msra.mxu0 %v86
    %107 = vmatpush.msra.mxu0 %v84
    %108 = vmatpush.msra.mxu0 %v82
    %109 = vmatpush.msra.mxu0 %v80
    %110 = vmatpush.msra.mxu0 %v78
    %111 = vmatpush.msra.mxu0 %v76
    %112 = vmatpush.msra.mxu0 %v74
    %113 = vmatpush.msra.mxu0 %v72
    %114 = vmatpush.msra.mxu0 %v70
    %115 = vmatpush.msra.mxu0 %v68
    %116 = vmatpush.msra.mxu0 %v66
    %117 = vmatpush.msra.mxu0 %v64
    %118 = vmatmul.f32.gmra.mxu0 %v62
    %v119 = vpop.f32.mrf.mxu0
    %v120 = vadd.f32 %v98, %v119
    %121 = vmatmul.f32.gmra.mxu0 %v63
    %v122 = vpop.f32.mrf.mxu0
    %v123 = vadd.f32 %v98, %v122
    %124 = vdwg.mxu0
    %125 = vmatpush.msra.mxu0 %v95
    %126 = vmatpush.msra.mxu0 %v93
    %127 = vmatpush.msra.mxu0 %v91
    %128 = vmatpush.msra.mxu0 %v89
    %129 = vmatpush.msra.mxu0 %v87
    %130 = vmatpush.msra.mxu0 %v85
    %131 = vmatpush.msra.mxu0 %v83
    %132 = vmatpush.msra.mxu0 %v81
    %133 = vmatpush.msra.mxu0 %v79
    %134 = vmatpush.msra.mxu0 %v77
    %135 = vmatpush.msra.mxu0 %v75
    %136 = vmatpush.msra.mxu0 %v73
    %137 = vmatpush.msra.mxu0 %v71
    %138 = vmatpush.msra.mxu0 %v69
    %139 = vmatpush.msra.mxu0 %v67
    %140 = vmatpush.msra.mxu0 %v65
    %141 = vmatmul.f32.gmra.mxu0 %v62
    %v142 = vpop.f32.mrf.mxu0
    %v143 = vadd.f32 %v99, %v142
    %144 = vmatmul.f32.gmra.mxu0 %v63
    %v145 = vpop.f32.mrf.mxu0
    %v146 = vadd.f32 %v99, %v145
    %147 = vdwg.mxu0
    %v148 = vxor.u32 %v120, 2147483648
    %v149 = vxor.u32 %v123, 2147483648
    %v150 = vmul.f32 %v148, 1.442695
    %v151 = vpow.pop %v150
    %v152 = vmul.f32 %v149, 1.442695
    %v153 = vpow.pop %v152
    %v154 = vadd.f32 %v151, 1.0
    %v155 = vadd.f32 %v153, 1.0
    %v156 = vrcp.pop %v154
    %v157 = vmul.f32 %v154, %v156
    %v158 = vsub.f32 1.0, %v157
    %v159 = vmul.f32 %v156, %v158
    %v160 = vadd.f32 %v156, %v159
    %vm161 = vweird.f32 %v154
    %vm162 = vweird.f32 %v156
    %vm163 = vmor %vm161, %vm162
    %v164 = vsel %vm163, %v156, %v160
    %v165 = vand.u32 2147483647, %v154
    %vm166 = vcmp.eq.f32.partialorder %v165, 8.507059e+37
    %v167 = vand.u32 %v154, 2147483648
    %v168 = vor.u32 1.1754944e-38, %v167
    %v169 = vsel %vm166, %v168, %v164
    %v170 = vmul.f32 1.0, %v169
    %v171 = vrcp.pop %v155
    %v172 = vmul.f32 %v155, %v171
    %v173 = vsub.f32 1.0, %v172
    %v174 = vmul.f32 %v171, %v173
    %v175 = vadd.f32 %v171, %v174
    %vm176 = vweird.f32 %v155
    %vm177 = vweird.f32 %v171
    %vm178 = vmor %vm176, %vm177
    %v179 = vsel %vm178, %v171, %v175
    %v180 = vand.u32 2147483647, %v155
    %vm181 = vcmp.eq.f32.partialorder %v180, 8.507059e+37
    %v182 = vand.u32 %v155, 2147483648
    %v183 = vor.u32 1.1754944e-38, %v182
    %v184 = vsel %vm181, %v183, %v179
    %v185 = vmul.f32 1.0, %v184
    %v186 = vmax.f32 %v143, 0.0
    %v187 = vmax.f32 %v146, 0.0
    %v188 = vsub.f32 %v186, %v62
    %v189 = vsub.f32 %v187, %v63
    %v190 = vmul.f32 %v170, %v188
    %v191 = vmul.f32 %v185, %v189
    %v192 = vadd.f32 %v62, %v190
    %v193 = vadd.f32 %v63, %v191
    %s194 = scalar_lea.vmem [#allocation5], 256
    %v195 = vld [vmem:[%s194] sm:$0xff]
    %v196 = vld [vmem:[%s194 + $0x8] sm:$0xff]
    %v197 = vld [vmem:[%s194 + $0x10] sm:$0xff]
    %v198 = vld [vmem:[%s194 + $0x18] sm:$0xff]
    %v199 = vld [vmem:[%s194 + $0x20] sm:$0xff]
    %v200 = vld [vmem:[%s194 + $0x28] sm:$0xff]
    %v201 = vld [vmem:[%s194 + $0x30] sm:$0xff]
    %v202 = vld [vmem:[%s194 + $0x38] sm:$0xff]
    %v203 = vld [vmem:[%s194 + $0x40] sm:$0xff]
    %v204 = vld [vmem:[%s194 + $0x48] sm:$0xff]
    %v205 = vld [vmem:[%s194 + $0x50] sm:$0xff]
    %v206 = vld [vmem:[%s194 + $0x58] sm:$0xff]
    %v207 = vld [vmem:[%s194 + $0x60] sm:$0xff]
    %v208 = vld [vmem:[%s194 + $0x68] sm:$0xff]
    %v209 = vld [vmem:[%s194 + $0x70] sm:$0xff]
    %v210 = vld [vmem:[%s194 + $0x78] sm:$0xff]
    %v211 = vld [vmem:[%s194 + $0x80] sm:$0xff]
    %v212 = vld [vmem:[%s194 + $0x88] sm:$0xff]
    %v213 = vld [vmem:[%s194 + $0x90] sm:$0xff]
    %v214 = vld [vmem:[%s194 + $0x98] sm:$0xff]
    %v215 = vld [vmem:[%s194 + $0xa0] sm:$0xff]
    %v216 = vld [vmem:[%s194 + $0xa8] sm:$0xff]
    %v217 = vld [vmem:[%s194 + $0xb0] sm:$0xff]
    %v218 = vld [vmem:[%s194 + $0xb8] sm:$0xff]
    %v219 = vld [vmem:[%s194 + $0xc0] sm:$0xff]
    %v220 = vld [vmem:[%s194 + $0xc8] sm:$0xff]
    %v221 = vld [vmem:[%s194 + $0xd0] sm:$0xff]
    %v222 = vld [vmem:[%s194 + $0xd8] sm:$0xff]
    %v223 = vld [vmem:[%s194 + $0xe0] sm:$0xff]
    %v224 = vld [vmem:[%s194 + $0xe8] sm:$0xff]
    %v225 = vld [vmem:[%s194 + $0xf0] sm:$0xff]
    %v226 = vld [vmem:[%s194 + $0xf8] sm:$0xff]
    %s227 = scalar_lea.vmem [#allocation7], 2
    %v228 = vld [vmem:[%s227] sm:$0x3]
    %v230 = vperm.slane %v228, 0
    %v231 = vperm.slane %v228, 1
    %234 = vmatpush.msra.mxu0 %v225
    %235 = vmatpush.msra.mxu0 %v223
    %236 = vmatpush.msra.mxu0 %v221
    %237 = vmatpush.msra.mxu0 %v219
    %238 = vmatpush.msra.mxu0 %v217
    %239 = vmatpush.msra.mxu0 %v215
    %240 = vmatpush.msra.mxu0 %v213
    %241 = vmatpush.msra.mxu0 %v211
    %242 = vmatpush.msra.mxu0 %v209
    %243 = vmatpush.msra.mxu0 %v207
    %244 = vmatpush.msra.mxu0 %v205
    %245 = vmatpush.msra.mxu0 %v203
    %246 = vmatpush.msra.mxu0 %v201
    %247 = vmatpush.msra.mxu0 %v199
    %248 = vmatpush.msra.mxu0 %v197
    %249 = vmatpush.msra.mxu0 %v195
    %250 = vmatmul.f32.gmra.mxu0 %v192
    %v251 = vpop.f32.mrf.mxu0
    %v252 = vadd.f32 %v230, %v251
    %253 = vmatmul.f32.gmra.mxu0 %v193
    %v254 = vpop.f32.mrf.mxu0
    %v255 = vadd.f32 %v230, %v254
    %256 = vdwg.mxu0
    %257 = vmatpush.msra.mxu0 %v226
    %258 = vmatpush.msra.mxu0 %v224
    %259 = vmatpush.msra.mxu0 %v222
    %260 = vmatpush.msra.mxu0 %v220
    %261 = vmatpush.msra.mxu0 %v218
    %262 = vmatpush.msra.mxu0 %v216
    %263 = vmatpush.msra.mxu0 %v214
    %264 = vmatpush.msra.mxu0 %v212
    %265 = vmatpush.msra.mxu0 %v210
    %266 = vmatpush.msra.mxu0 %v208
    %267 = vmatpush.msra.mxu0 %v206
    %268 = vmatpush.msra.mxu0 %v204
    %269 = vmatpush.msra.mxu0 %v202
    %270 = vmatpush.msra.mxu0 %v200
    %271 = vmatpush.msra.mxu0 %v198
    %272 = vmatpush.msra.mxu0 %v196
    %273 = vmatmul.f32.gmra.mxu0 %v192
    %v274 = vpop.f32.mrf.mxu0
    %v275 = vadd.f32 %v231, %v274
    %276 = vmatmul.f32.gmra.mxu0 %v193
    %v277 = vpop.f32.mrf.mxu0
    %v278 = vadd.f32 %v231, %v277
    %279 = vdwg.mxu0
    %v280 = vxor.u32 %v252, 2147483648
    %v281 = vxor.u32 %v255, 2147483648
    %v282 = vmul.f32 %v280, 1.442695
    %v283 = vpow.pop %v282
    %v284 = vmul.f32 %v281, 1.442695
    %v285 = vpow.pop %v284
    %v286 = vadd.f32 %v283, 1.0
    %v287 = vadd.f32 %v285, 1.0
    %v288 = vrcp.pop %v286
    %v289 = vmul.f32 %v286, %v288
    %v290 = vsub.f32 1.0, %v289
    %v291 = vmul.f32 %v288, %v290
    %v292 = vadd.f32 %v288, %v291
    %vm293 = vweird.f32 %v286
    %vm294 = vweird.f32 %v288
    %vm295 = vmor %vm293, %vm294
    %v296 = vsel %vm295, %v288, %v292
    %v297 = vand.u32 2147483647, %v286
    %vm298 = vcmp.eq.f32.partialorder %v297, 8.507059e+37
    %v299 = vand.u32 %v286, 2147483648
    %v300 = vor.u32 1.1754944e-38, %v299
    %v301 = vsel %vm298, %v300, %v296
    %v302 = vmul.f32 1.0, %v301
    %v303 = vrcp.pop %v287
    %v304 = vmul.f32 %v287, %v303
    %v305 = vsub.f32 1.0, %v304
    %v306 = vmul.f32 %v303, %v305
    %v307 = vadd.f32 %v303, %v306
    %vm308 = vweird.f32 %v287
    %vm309 = vweird.f32 %v303
    %vm310 = vmor %vm308, %vm309
    %v311 = vsel %vm310, %v303, %v307
    %v312 = vand.u32 2147483647, %v287
    %vm313 = vcmp.eq.f32.partialorder %v312, 8.507059e+37
    %v314 = vand.u32 %v287, 2147483648
    %v315 = vor.u32 1.1754944e-38, %v314
    %v316 = vsel %vm313, %v315, %v311
    %v317 = vmul.f32 1.0, %v316
    %v318 = vmax.f32 %v275, 0.0
    %v319 = vmax.f32 %v278, 0.0
    %v320 = vsub.f32 %v318, %v192
    %v321 = vsub.f32 %v319, %v193
    %v322 = vmul.f32 %v302, %v320
    %v323 = vmul.f32 %v317, %v321
    %v324 = vadd.f32 %v192, %v322
    %v325 = vadd.f32 %v193, %v323
    %326 = vst [vmem:[#allocation8] sm:$0xff] %v324
    %327 = vst [vmem:[#allocation8 + $0x8] sm:$0xff] %v325
    // Predicated region
    $region26: #{tpu_custom_call.1} parent=1 // pred_check
      _
    $region27: #{tpu_custom_call.1} parent=1 // pred_check_branch
      %329 = sbr.rel (0) target = $region29
    $region28: #{tpu_custom_call.1} parent=1 // pred_region
      %331 = vsyncadd [#allocation4], 0
      %s332 = sshll.u32 [#allocation8], 4
      %s333 = int_to_ptr.vmem [resolvable:$true] %s332
      %s334 = sshll.u32 %s3, 4
      %s335 = int_to_ptr.hbm [resolvable:$true] %s334
      %340 = dma.vmem_to_hbm [thread:$0]  %s333, 256, %s335, [#allocation4], 128, 128, 8
    $region29: #{tpu_custom_call.1} parent=1 // pred_fallthru
      _
    // Predicated region
    $region30: #{tpu_custom_call.1} parent=1 // pred_check
      _
    $region31: #{tpu_custom_call.1} parent=1 // pred_check_branch
      %342 = sbr.rel (0) target = $region33
    $region32: #{tpu_custom_call.1} parent=1 // pred_region
      %344 = dma.done [#allocation4], 256
    $region33: #{tpu_custom_call.1} parent=1 // pred_fallthru
      _
    %345 = vsyncpa [#allocation3], 1
    %346 = vsyncpa [#allocation6], 1
    %347 = vsyncpa [#allocation4], 1

</llo_original>
